<compile_context>
chip_gen: v5e
topology: v5e:2x2
jax: 0.10.0
libtpu: 0.0.40
codegen_flags: <defaults>
</compile_context>

<pallas_src>
import jax
import jax.numpy as jnp
from jax.experimental import pallas as pl
from jax.experimental.pallas import tpu as pltpu


def _post_select_gate_kernel(ctx_ref, bias_ref, w1_ref, w2d_ref, b2d_ref, out_ref):
    # ctx_ref : (1, TILE_L, 2H)  contexts tile (f32 or bf16)
    # bias_ref: (1, 1, H)        per-batch pre-ReLU bias (title/comment/b1), f32
    # w1_ref  : (2H, H)          W1 block acting on contexts (f32 or bf16)
    # w2d_ref : (1, H)           w2[:, 0] - w2[:, 1], f32
    # b2d_ref : (1, 1)           b2[0] - b2[1], f32
    # out_ref : (1, 1, TILE_L)   lane-dense gate[..., 0]
    h = jnp.dot(ctx_ref[0], w1_ref[...], preferred_element_type=jnp.float32)  # (TILE_L, H)
    h = jnp.maximum(h + bias_ref[0], 0.0)                                     # f32 bias-add + ReLU

    # Logit difference of the 2-class head -> exact 2-class softmax via sigmoid.
    d = jnp.sum(h * w2d_ref[...], axis=-1)        # (TILE_L,)   lane reduce (XLU)
    z = d[None, :] + b2d_ref[...]                 # (1, TILE_L) lane-dense
    # exp runs on the EUP; approx=True would also move the divide to the EUP at
    # ~1e-4 relative error (kept exact here to preserve the 1e-5 demo check).
    g0 = pl.reciprocal(1.0 + jnp.exp(-z), approx=False)

    out_ref[0] = g0.astype(out_ref.dtype)         # single lane-dense store


def _pick_tile_l(B, L, twoH, itemsize):
    """Pick the L-tile and padded L.

    Small/medium L (and >=2 grid programs available via B) -> one full-L tile per
    batch (block == full dim is always layout-legal).  Otherwise lane-aligned
    tiles (multiples of 128) with L padded up, so the output last dim stays
    lane-dense and pipelining has >= 2 steps.
    """
    budget = 16 * 1024 * 1024  # double-buffered ctx-tile VMEM budget
    if 2 * L * twoH * itemsize <= budget and (B >= 2 or L <= 128):
        return L, L
    tile = 128
    for t in (1024, 512, 256):
        if 2 * t * twoH * itemsize <= budget and t <= max(128, L // 2):
            tile = t
            break
    l_pad = -(-L // tile) * tile
    return tile, l_pad


def post_select_gate(contexts, title, comment_context, params, *, mxu_dtype=None):
    """contexts: [B, L, 2H], title: [B, 2H], comment_context: [B, 2H] -> [B, L, 2].

    mxu_dtype: optionally jnp.bfloat16 to cast contexts/W1 for the MXU (v6e/v7x);
    all elementwise math, accumulation and the output stay f32.
    """
    B, L, twoH = contexts.shape
    H = twoH // 2

    w1c, w1t, w1cc = params["w1c"], params["w1t"], params["w1cc"]   # each (2H, H)
    b1 = params["b1"].reshape(1, H)
    w2 = params["w2"]                                               # (H, 2)
    b2 = params["b2"]                                               # (2,)

    # Hoisted: per-batch pre-ReLU bias = title @ W1_t + comment @ W1_cc + b1.
    # Tiny [B, H] XLA matmul; indexed per batch-program by the kernel (no [M, H]
    # broadcast materialization).
    bias_b = (title @ w1t + comment_context @ w1cc + b1).astype(jnp.float32)
    bias_b = bias_b.reshape(B, 1, H)

    # Hoisted: fold the 2-class head into a difference vector / scalar.
    w2d = (w2[:, 0] - w2[:, 1]).reshape(1, H).astype(jnp.float32)
    b2d = (b2[0] - b2[1]).reshape(1, 1).astype(jnp.float32)

    ctx = contexts
    w1 = w1c
    if mxu_dtype is not None:
        ctx = ctx.astype(mxu_dtype)
        w1 = w1.astype(mxu_dtype)
    ctx_itemsize = jnp.dtype(ctx.dtype).itemsize

    tile_l, l_pad = _pick_tile_l(B, L, twoH, ctx_itemsize)
    if l_pad != L:
        ctx = jnp.pad(ctx, ((0, 0), (0, l_pad - L), (0, 0)))
    grid = (B, l_pad // tile_l)

    # VMEM budget: double-buffered ctx tiles + (double-buffered) resident W1 +
    # small bias/out/head buffers.  Capped at 64 MiB so it is valid on v7x.
    est = (2 * tile_l * twoH * ctx_itemsize
           + 2 * twoH * H * jnp.dtype(w1.dtype).itemsize
           + 2 * tile_l * 4
           + 4 * H * 4 + 256)
    vmem_limit = int(min(max(2 * est, 32 * 1024 * 1024), 64 * 1024 * 1024))

    g0_padded = pl.pallas_call(
        _post_select_gate_kernel,
        out_shape=jax.ShapeDtypeStruct((B, 1, l_pad), jnp.float32),
        grid_spec=pltpu.PrefetchScalarGridSpec(
            num_scalar_prefetch=0,
            grid=grid,
            in_specs=[
                pl.BlockSpec((1, tile_l, twoH), lambda b, l: (b, l, 0)),  # contexts tile
                pl.BlockSpec((1, 1, H),         lambda b, l: (b, 0, 0)),  # per-batch bias
                pl.BlockSpec((twoH, H),         lambda b, l: (0, 0)),     # W1 (contexts block)
                pl.BlockSpec((1, H),            lambda b, l: (0, 0)),     # w2 difference row
                pl.BlockSpec((1, 1),            lambda b, l: (0, 0)),     # b2 difference
            ],
            out_specs=pl.BlockSpec((1, 1, tile_l), lambda b, l: (b, 0, l)),
        ),
        compiler_params=pltpu.CompilerParams(
            dimension_semantics=("parallel", "parallel"),
            vmem_limit_bytes=vmem_limit,
        ),
    )(ctx, bias_b, w1, w2d, b2d)

    # Lane-dense (B, 1, L_pad) -> [B, L, 2]; gate[...,1] = 1 - gate[...,0].
    g0 = g0_padded[:, 0, :L]
    return jnp.stack([g0, 1.0 - g0], axis=-1)


def _reference(contexts, title, comment_context, params):
    """Pure-JAX reference mirroring the PyTorch forward."""
    B, L, _ = contexts.shape
    title_e = jnp.broadcast_to(title[:, None, :], (B, L, title.shape[-1]))
    cc_e = jnp.broadcast_to(comment_context[:, None, :], (B, L, comment_context.shape[-1]))
    x = jnp.concatenate([contexts, title_e, cc_e], axis=-1)                       # (B, L, 6H)
    w1 = jnp.concatenate([params["w1c"], params["w1t"], params["w1cc"]], axis=0)  # (6H, H)
    h = jax.nn.relu(x @ w1 + params["b1"])
    logits = h @ params["w2"] + params["b2"]
    return jax.nn.softmax(logits, axis=-1)


def make_params(encoder_hidden_size, key):
    """Deterministic init for linear1 (6H -> H) and linear2 (H -> 2), stored transposed."""
    H = encoder_hidden_size
    k1, k2, k3, k4 = jax.random.split(key, 4)
    bound1 = 1.0 / jnp.sqrt(6.0 * H)
    bound2 = 1.0 / jnp.sqrt(float(H))
    w1_t = jax.random.uniform(k1, (6 * H, H), jnp.float32, -bound1, bound1)  # = W1^T
    b1 = jax.random.uniform(k2, (H,), jnp.float32, -bound1, bound1)
    w2_t = jax.random.uniform(k3, (H, 2), jnp.float32, -bound2, bound2)      # = W2^T
    b2 = jax.random.uniform(k4, (2,), jnp.float32, -bound2, bound2)
    return {
        "w1c": w1_t[0 * 2 * H:1 * 2 * H],   # acts on contexts
        "w1t": w1_t[1 * 2 * H:2 * 2 * H],   # acts on title
        "w1cc": w1_t[2 * 2 * H:3 * 2 * H],  # acts on comment_context
        "b1": b1,
        "w2": w2_t,
        "b2": b2,
    }


if __name__ == "__main__":
    # Small shapes: batch=2, seq=8, encoder_hidden_size=32 (so feature dim 2H = 64).
    B, L, H = 2, 8, 32
    key = jax.random.PRNGKey(0)
    kc, kt, kcc, kp = jax.random.split(key, 4)

    contexts = jax.random.normal(kc, (B, L, 2 * H), jnp.float32)
    title = jax.random.normal(kt, (B, 2 * H), jnp.float32)
    comment_context = jax.random.normal(kcc, (B, 2 * H), jnp.float32)
    params = make_params(H, kp)

    gates = post_select_gate(contexts, title, comment_context, params)
    gates = jax.block_until_ready(gates)

    ref = _reference(contexts, title, comment_context, params)
    assert gates.shape == (B, L, 2)
    assert jnp.allclose(gates, ref, atol=1e-5, rtol=1e-5)

    print("KERNEL_OK")
</pallas_src>

<mosaic_0001>
module attributes {stable_mosaic.version = 11 : i64} {
  func.func @_post_select_gate_kernel(%arg0: i32, %arg1: i32, %arg2: memref<1x8x64xf32, #tpu.memory_space<vmem>>, %arg3: memref<1x1x32xf32, #tpu.memory_space<vmem>>, %arg4: memref<64x32xf32, #tpu.memory_space<vmem>>, %arg5: memref<1x32xf32, #tpu.memory_space<vmem>>, %arg6: memref<1x1xf32, #tpu.memory_space<vmem>>, %arg7: memref<1x1x8xf32, #tpu.memory_space<vmem>>) attributes {dimension_semantics = [#tpu.dimension_semantics<parallel>, #tpu.dimension_semantics<parallel>], iteration_bounds = array<i64: 2, 1>, scalar_prefetch = 0 : i64, scratch_operands = 0 : i64, tpu.core_type = #tpu.core_type<tc>, window_params = [{transform_indices = @transform_0, window_bounds = array<i64: 1, 8, 64>}, {transform_indices = @transform_1, window_bounds = array<i64: 1, 1, 32>}, {pipeline_mode = #tpu.pipeline_mode<synchronous>, transform_indices = @transform_2, window_bounds = array<i64: 64, 32>}, {pipeline_mode = #tpu.pipeline_mode<synchronous>, transform_indices = @transform_3, window_bounds = array<i64: 1, 32>}, {pipeline_mode = #tpu.pipeline_mode<synchronous>, transform_indices = @transform_4, window_bounds = array<i64: 1, 1>}, {transform_indices = @transform_5, window_bounds = array<i64: 1, 1, 8>}]} {
    %c0 = arith.constant 0 : index
    %c0_0 = arith.constant 0 : index
    %c0_1 = arith.constant 0 : index
    %0 = vector.load %arg2[%c0, %c0_0, %c0_1] : memref<1x8x64xf32, #tpu.memory_space<vmem>>, vector<1x8x64xf32>
    %1 = vector.shape_cast %0 : vector<1x8x64xf32> to vector<8x64xf32>
    %c0_2 = arith.constant 0 : index
    %c0_3 = arith.constant 0 : index
    %2 = vector.load %arg4[%c0_2, %c0_3] : memref<64x32xf32, #tpu.memory_space<vmem>>, vector<64x32xf32>
    %cst = arith.constant dense<0.000000e+00> : vector<8x32xf32>
    %3 = tpu.matmul %1, %2, %cst {dimension_numbers = #tpu.dot_dimension_numbers<[1], [0], [0], [1], [0, 0, 1, 1], [], []>} : vector<8x64xf32>, vector<64x32xf32>, vector<8x32xf32> -> vector<8x32xf32>
    %c0_4 = arith.constant 0 : index
    %c0_5 = arith.constant 0 : index
    %c0_6 = arith.constant 0 : index
    %4 = vector.load %arg3[%c0_4, %c0_5, %c0_6] : memref<1x1x32xf32, #tpu.memory_space<vmem>>, vector<1x1x32xf32>
    %5 = vector.shape_cast %4 : vector<1x1x32xf32> to vector<1x32xf32>
    %6 = vector.broadcast %5 : vector<1x32xf32> to vector<8x32xf32>
    %7 = arith.addf %3, %6 : vector<8x32xf32>
    %cst_7 = arith.constant 0.000000e+00 : f32
    %8 = vector.broadcast %cst_7 : f32 to vector<8x32xf32>
    %9 = arith.maximumf %7, %8 : vector<8x32xf32>
    %c0_8 = arith.constant 0 : index
    %c0_9 = arith.constant 0 : index
    %10 = vector.load %arg5[%c0_8, %c0_9] : memref<1x32xf32, #tpu.memory_space<vmem>>, vector<1x32xf32>
    %11 = vector.broadcast %10 : vector<1x32xf32> to vector<8x32xf32>
    %12 = arith.mulf %9, %11 : vector<8x32xf32>
    %cst_10 = arith.constant dense<0.000000e+00> : vector<8xf32>
    %13 = vector.multi_reduction <add>, %12, %cst_10 [1] : vector<8x32xf32> to vector<8xf32>
    %14 = vector.shape_cast %13 : vector<8xf32> to vector<1x8xf32>
    %c0_11 = arith.constant 0 : index
    %c0_12 = arith.constant 0 : index
    %15 = vector.load %arg6[%c0_11, %c0_12] : memref<1x1xf32, #tpu.memory_space<vmem>>, vector<1x1xf32>
    %16 = vector.broadcast %15 : vector<1x1xf32> to vector<1x8xf32>
    %17 = arith.addf %14, %16 : vector<1x8xf32>
    %cst_13 = arith.constant 0.000000e+00 : f32
    %18 = vector.broadcast %cst_13 : f32 to vector<1x8xf32>
    %19 = arith.subf %18, %17 : vector<1x8xf32>
    %20 = math.exp %19 : vector<1x8xf32>
    %cst_14 = arith.constant 1.000000e+00 : f32
    %21 = vector.broadcast %cst_14 : f32 to vector<1x8xf32>
    %22 = arith.addf %21, %20 : vector<1x8xf32>
    %23 = tpu.reciprocal %22 : vector<1x8xf32> -> vector<1x8xf32>
    %c0_15 = arith.constant 0 : index
    %c0_16 = arith.constant 0 : index
    %c0_17 = arith.constant 0 : index
    %24 = vector.load %arg7[%c0_15, %c0_16, %c0_17] : memref<1x1x8xf32, #tpu.memory_space<vmem>>, vector<1x1x8xf32>
    %25 = vector.shape_cast %24 : vector<1x1x8xf32> to vector<1x8xf32>
    %26 = vector.shape_cast %23 : vector<1x8xf32> to vector<1x1x8xf32>
    tpu.vector_store %arg7[%c0_15, %c0_16, %c0_17], %26 {strides = array<i32>} : memref<1x1x8xf32, #tpu.memory_space<vmem>>, vector<1x1x8xf32>,
    return
  }
  func.func @transform_0(%arg0: i32, %arg1: i32) -> (i32, i32, i32) {
    %c0_i32 = arith.constant 0 : i32
    %c0_i32_0 = arith.constant 0 : i32
    return %arg0, %arg1, %c0_i32 : i32, i32, i32
  }
  func.func @transform_1(%arg0: i32, %arg1: i32) -> (i32, i32, i32) {
    %c0_i32 = arith.constant 0 : i32
    %c0_i32_0 = arith.constant 0 : i32
    %c0_i32_1 = arith.constant 0 : i32
    return %arg0, %c0_i32, %c0_i32_0 : i32, i32, i32
  }
  func.func @transform_2(%arg0: i32, %arg1: i32) -> (i32, i32) {
    %c0_i32 = arith.constant 0 : i32
    %c0_i32_0 = arith.constant 0 : i32
    %c0_i32_1 = arith.constant 0 : i32
    return %c0_i32, %c0_i32_0 : i32, i32
  }
  func.func @transform_3(%arg0: i32, %arg1: i32) -> (i32, i32) {
    %c0_i32 = arith.constant 0 : i32
    %c0_i32_0 = arith.constant 0 : i32
    %c0_i32_1 = arith.constant 0 : i32
    return %c0_i32, %c0_i32_0 : i32, i32
  }
  func.func @transform_4(%arg0: i32, %arg1: i32) -> (i32, i32) {
    %c0_i32 = arith.constant 0 : i32
    %c0_i32_0 = arith.constant 0 : i32
    %c0_i32_1 = arith.constant 0 : i32
    return %c0_i32, %c0_i32_0 : i32, i32
  }
  func.func @transform_5(%arg0: i32, %arg1: i32) -> (i32, i32, i32) {
    %c0_i32 = arith.constant 0 : i32
    %c0_i32_0 = arith.constant 0 : i32
    return %arg0, %c0_i32, %arg1 : i32, i32, i32
  }
}

</mosaic_0001>

<llo_original>
// kernel: tpu_custom_call.1
$region0: #{tpu_custom_call.1}
  #allocation0 [shape = 'u32[]', space=smem, size = 0x4, offset = 0x4, fixed_abs, tag = 'smem constant byte address 0x4 - core index']
  #allocation1 [shape = 'u32[72,128]{1,0:T(1,128)}', space=vmem, size = 0x9000, scoped, tag = 'internal scratch']
  #allocation2 [shape = 'f32[1,1]{1,0:T(1,128)S(1)}', space=vmem, size = 0x200, scoped, tag = 'scoped memory for tpu_custom_call.1']
  %s0 = inlined_call_operand.vmem [shape: f32[2,8,64], index: 0, kind: input, shape index: {}]
  %s1 = inlined_call_operand.vmem [shape: f32[2,1,32], index: 1, kind: input, shape index: {}]
  %s2 = inlined_call_operand.vmem [shape: f32[64,32], index: 2, kind: input, shape index: {}]
  %s3 = inlined_call_operand.vmem [shape: f32[1,32], index: 3, kind: input, shape index: {}]
  %s4 = inlined_call_operand.<no memory space> [shape: f32[1,1], index: 4, kind: input, shape index: {}]
  %s5 = inlined_call_operand.hbm [shape: f32[2,1,8], index: 5, kind: output, shape index: {}]
  %s6 = sld [smem:[#allocation0]]
  $region53: #{tpu_custom_call.1} parent=0
    _
  %s8 = ssub.s32 1, %s6
  %s9 = scalar_select 0, %s8, %s6
  %v10 = vstv %s4
  %11 = vst [vmem:[#allocation2] sm:$0x1] %v10
  $region1: #{tpu_custom_call.1} parent=0
    #allocation3 [shape = 'u8[1024]{0}', space=vmem, size = 0x400, scoped, tag = 'output window, operand 0']
    #allocation4 [shape = 's32[2]{0}', space=sflag, size = 0x8, scoped, tag = 'scoped memory for tpu_custom_call.1']
    %12 = vsyncpa [#allocation4], 0
    %s13 = scalar_lea.sflag [#allocation4], 1
    %14 = vsyncpa %s13, 0
    loop: start=0, step=1, limit=4
    $region2: #{tpu_custom_call.1} parent=1 // loop_pre_header
      _
    $region3: #{tpu_custom_call.1} parent=1 // loop_header
      %s16 = sphi 0, %s20
      %p17 = scmp.ge.s32.totalorder %s16, 4
      %s23 = sphi 0, %s35
      %s24 = sphi 0, %s31
      %s25 = sphi 0, %s23
      %s26 = sphi 0, %s24
      %s27 = sphi 0, %s25
      %s28 = sphi 0, %s26
      %s40 = sphi 0, %s42
      %s43 = sphi 0, %s40
      %s44 = sphi 0, %s43
      %s60 = sphi 0, %s44
      %s66 = sphi 0, %s68
      %s69 = sphi 0, %s66
      %s70 = sphi 0, %s69
      %s86 = sphi 0, %s70
      %s90 = sphi 0, %s90
      %s92 = sphi 0, %s90
      %s93 = sphi 0, %s92
      %s107 = sphi 0, %s93
      %s111 = sphi 0, %s111
      %s113 = sphi 0, %s111
      %s114 = sphi 0, %s113
      %s128 = sphi 0, %s114
      %s132 = sphi 0, %s132
      %s134 = sphi 0, %s132
      %s135 = sphi 0, %s134
      %s149 = sphi 0, %s135
      %s157 = sphi 0, %s159
      %s160 = sphi 0, %s157
      %s161 = sphi 0, %s160
      %s177 = sphi 0, %s161
    $region4: #{tpu_custom_call.1} parent=1 // loop_header_branch
      %19 = sbr.rel (%p17) target = $region8
    $region5: #{tpu_custom_call.1} parent=1 // loop_body
      %s21 = ssub.s32 %s16, 1
      %s22 = ssub.s32 %s16, 2
      %s29 = sadd.s32 1, %s24
      %p30 = scmp.ge.s32.totalorder %s29, 1
      %s31 = scalar_select %p30, 0, %s29
      %s32 = sadd.s32 1, %s23
      %s33 = scalar_select %p30, %s32, %s23
      %p34 = scmp.ge.s32.totalorder %s33, 2
      %s35 = scalar_select %p34, 0, %s33
      %s36 = ssub.s32 %s23, %s35
      %s37 = ssub.s32 %s24, %s31
      %s38 = sor.u32 %s36, %s37
      %p39 = scmp.eq.s32.totalorder %s38, 0
      %s41 = sadd.s32 %s40, 1
      %s42 = scalar_select %p39, %s40, %s41
      %p45 = pneg %p39
      %p46 = scmp.eq.s32.totalorder %s16, 1
      %p47 = por %p45, %p46
      %p48 = scmp.ne.s32.totalorder %s40, %s43
      %p49 = scmp.eq.s32.totalorder %s16, 0
      %p50 = por %p48, %p49
      %p51 = scmp.ne.s32.totalorder %s40, %s43
      %p52 = scmp.eq.s32.totalorder %s21, 1
      %p53 = por %p51, %p52
      %p54 = scmp.ne.s32.totalorder %s43, %s44
      %p55 = scmp.eq.s32.totalorder %s21, 0
      %p56 = por %p54, %p55
      %p57 = scmp.ne.s32.totalorder %s43, %s44
      %p58 = scmp.eq.s32.totalorder %s22, 1
      %p59 = por %p57, %p58
      %p61 = scmp.ne.s32.totalorder %s44, %s60
      %p62 = scmp.eq.s32.totalorder %s22, 0
      %p63 = por %p61, %p62
      %s64 = ssub.s32 %s23, %s35
      %p65 = scmp.eq.s32.totalorder %s64, 0
      %s67 = sadd.s32 %s66, 1
      %s68 = scalar_select %p65, %s66, %s67
      %p71 = pneg %p65
      %p72 = scmp.eq.s32.totalorder %s16, 1
      %p73 = por %p71, %p72
      %p74 = scmp.ne.s32.totalorder %s66, %s69
      %p75 = scmp.eq.s32.totalorder %s16, 0
      %p76 = por %p74, %p75
      %p77 = scmp.ne.s32.totalorder %s66, %s69
      %p78 = scmp.eq.s32.totalorder %s21, 1
      %p79 = por %p77, %p78
      %p80 = scmp.ne.s32.totalorder %s69, %s70
      %p81 = scmp.eq.s32.totalorder %s21, 0
      %p82 = por %p80, %p81
      %p83 = scmp.ne.s32.totalorder %s69, %s70
      %p84 = scmp.eq.s32.totalorder %s22, 1
      %p85 = por %p83, %p84
      %p87 = scmp.ne.s32.totalorder %s70, %s86
      %p88 = scmp.eq.s32.totalorder %s22, 0
      %p89 = por %p87, %p88
      %s91 = sadd.s32 %s90, 1
      %p94 = scmp.eq.s32.totalorder %s16, 1
      %p95 = scmp.ne.s32.totalorder %s90, %s92
      %p96 = scmp.eq.s32.totalorder %s16, 0
      %p97 = por %p95, %p96
      %p98 = scmp.ne.s32.totalorder %s90, %s92
      %p99 = scmp.eq.s32.totalorder %s21, 1
      %p100 = por %p98, %p99
      %p101 = scmp.ne.s32.totalorder %s92, %s93
      %p102 = scmp.eq.s32.totalorder %s21, 0
      %p103 = por %p101, %p102
      %p104 = scmp.ne.s32.totalorder %s92, %s93
      %p105 = scmp.eq.s32.totalorder %s22, 1
      %p106 = por %p104, %p105
      %p108 = scmp.ne.s32.totalorder %s93, %s107
      %p109 = scmp.eq.s32.totalorder %s22, 0
      %p110 = por %p108, %p109
      %s112 = sadd.s32 %s111, 1
      %p115 = scmp.eq.s32.totalorder %s16, 1
      %p116 = scmp.ne.s32.totalorder %s111, %s113
      %p117 = scmp.eq.s32.totalorder %s16, 0
      %p118 = por %p116, %p117
      %p119 = scmp.ne.s32.totalorder %s111, %s113
      %p120 = scmp.eq.s32.totalorder %s21, 1
      %p121 = por %p119, %p120
      %p122 = scmp.ne.s32.totalorder %s113, %s114
      %p123 = scmp.eq.s32.totalorder %s21, 0
      %p124 = por %p122, %p123
      %p125 = scmp.ne.s32.totalorder %s113, %s114
      %p126 = scmp.eq.s32.totalorder %s22, 1
      %p127 = por %p125, %p126
      %p129 = scmp.ne.s32.totalorder %s114, %s128
      %p130 = scmp.eq.s32.totalorder %s22, 0
      %p131 = por %p129, %p130
      %s133 = sadd.s32 %s132, 1
      %p136 = scmp.eq.s32.totalorder %s16, 1
      %p137 = scmp.ne.s32.totalorder %s132, %s134
      %p138 = scmp.eq.s32.totalorder %s16, 0
      %p139 = por %p137, %p138
      %p140 = scmp.ne.s32.totalorder %s132, %s134
      %p141 = scmp.eq.s32.totalorder %s21, 1
      %p142 = por %p140, %p141
      %p143 = scmp.ne.s32.totalorder %s134, %s135
      %p144 = scmp.eq.s32.totalorder %s21, 0
      %p145 = por %p143, %p144
      %p146 = scmp.ne.s32.totalorder %s134, %s135
      %p147 = scmp.eq.s32.totalorder %s22, 1
      %p148 = por %p146, %p147
      %p150 = scmp.ne.s32.totalorder %s135, %s149
      %p151 = scmp.eq.s32.totalorder %s22, 0
      %p152 = por %p150, %p151
      %s153 = ssub.s32 %s23, %s35
      %s154 = ssub.s32 %s24, %s31
      %s155 = sor.u32 %s153, %s154
      %p156 = scmp.eq.s32.totalorder %s155, 0
      %s158 = sadd.s32 %s157, 1
      %s159 = scalar_select %p156, %s157, %s158
      %p162 = pneg %p156
      %p163 = scmp.eq.s32.totalorder %s16, 1
      %p164 = por %p162, %p163
      %p165 = scmp.ne.s32.totalorder %s157, %s160
      %p166 = scmp.eq.s32.totalorder %s16, 0
      %p167 = por %p165, %p166
      %p168 = scmp.ne.s32.totalorder %s157, %s160
      %p169 = scmp.eq.s32.totalorder %s21, 1
      %p170 = por %p168, %p169
      %p171 = scmp.ne.s32.totalorder %s160, %s161
      %p172 = scmp.eq.s32.totalorder %s21, 0
      %p173 = por %p171, %p172
      %p174 = scmp.ne.s32.totalorder %s160, %s161
      %p175 = scmp.eq.s32.totalorder %s22, 1
      %p176 = por %p174, %p175
      %p178 = scmp.ne.s32.totalorder %s161, %s177
      %p179 = scmp.eq.s32.totalorder %s22, 0
      %p180 = por %p178, %p179
      %p181 = scmp.le.s32.totalorder 1, %s16
      %p182 = scmp.lt.s32.totalorder %s16, 3
      %p183 = pnand %p181, %p182
      %p184 = pneg %p183
      // Predicated region
      $region9: #{tpu_custom_call.1} parent=5 // pred_check
        _
      $region10: #{tpu_custom_call.1} parent=5 // pred_check_branch
        %186 = sbr.rel (%p183) target = $region12
      $region11: #{tpu_custom_call.1} parent=5 // pred_region
        %s187 = ssub.s32 %s16, 1
        // Predicated region
        $region13: #{tpu_custom_call.1} parent=11 // pred_check
          %p188 = pneg %p103
        $region14: #{tpu_custom_call.1} parent=11 // pred_check_branch
          %190 = sbr.rel (%p188) target = $region16
        $region15: #{tpu_custom_call.1} parent=11 // pred_region
          _
        $region16: #{tpu_custom_call.1} parent=11 // pred_fallthru
          _
        // Predicated region
        $region17: #{tpu_custom_call.1} parent=11 // pred_check
          %p191 = pneg %p124
        $region18: #{tpu_custom_call.1} parent=11 // pred_check_branch
          %193 = sbr.rel (%p191) target = $region20
        $region19: #{tpu_custom_call.1} parent=11 // pred_region
          _
        $region20: #{tpu_custom_call.1} parent=11 // pred_fallthru
          _
        // Predicated region
        $region21: #{tpu_custom_call.1} parent=11 // pred_check
          %p194 = pneg %p145
        $region22: #{tpu_custom_call.1} parent=11 // pred_check_branch
          %196 = sbr.rel (%p194) target = $region24
        $region23: #{tpu_custom_call.1} parent=11 // pred_region
          _
        $region24: #{tpu_custom_call.1} parent=11 // pred_fallthru
          _
      $region12: #{tpu_custom_call.1} parent=5 // pred_fallthru
        _
      %p197 = scmp.lt.s32.totalorder %s16, 2
      // Predicated region
      $region25: #{tpu_custom_call.1} parent=5 // pred_check
        %p198 = pneg %p197
      $region26: #{tpu_custom_call.1} parent=5 // pred_check_branch
        %200 = sbr.rel (%p198) target = $region28
      $region27: #{tpu_custom_call.1} parent=5 // pred_region
        // Predicated region
        $region29: #{tpu_custom_call.1} parent=27 // pred_check
          %p201 = pneg %p50
        $region30: #{tpu_custom_call.1} parent=27 // pred_check_branch
          %203 = sbr.rel (%p201) target = $region32
        $region31: #{tpu_custom_call.1} parent=27 // pred_region
          %p204 = scmp.lt.s32.totalorder %s23, 1
          %s205 = scalar_select %p204, %s23, 1
          %p206 = scmp.lt.s32.totalorder %s24, 0
          %s207 = scalar_select %p206, %s24, 0
          %s208 = sadd.s32 %s207, %s205
          %s209 = smul.addr %s208, 8
          %s210 = scalar_lea.vmem %s0, %s209
        $region32: #{tpu_custom_call.1} parent=27 // pred_fallthru
          _
        // Predicated region
        $region33: #{tpu_custom_call.1} parent=27 // pred_check
          %p211 = pneg %p76
        $region34: #{tpu_custom_call.1} parent=27 // pred_check_branch
          %213 = sbr.rel (%p211) target = $region36
        $region35: #{tpu_custom_call.1} parent=27 // pred_region
          %p214 = scmp.lt.s32.totalorder %s23, 1
          %s215 = scalar_select %p214, %s23, 1
          %s216 = scalar_lea.vmem %s1, %s215
        $region36: #{tpu_custom_call.1} parent=27 // pred_fallthru
          _
      $region28: #{tpu_custom_call.1} parent=5 // pred_fallthru
        _
      %p217 = scmp.le.s32.totalorder 1, %s16
      %p218 = scmp.lt.s32.totalorder %s16, 3
      %p219 = pnand %p217, %p218
      %p220 = pneg %p219
      // Predicated region
      $region37: #{tpu_custom_call.1} parent=5 // pred_check
        _
      $region38: #{tpu_custom_call.1} parent=5 // pred_check_branch
        %222 = sbr.rel (%p219) target = $region40
      $region39: #{tpu_custom_call.1} parent=5 // pred_region
        %s223 = ssub.s32 %s16, 1
        %p224 = scmp.lt.s32.totalorder %s25, 1
        %s225 = scalar_select %p224, %s25, 1
        %p226 = scmp.lt.s32.totalorder %s26, 0
        %s227 = scalar_select %p226, %s26, 0
        %s228 = sadd.s32 %s227, %s225
        %s229 = smul.addr %s228, 8
        %s230 = scalar_lea.vmem %s0, %s229
        %p231 = pneg %p56
        %p232 = pneg %p53
        %p233 = scmp.lt.s32.totalorder %s25, 1
        %s234 = scalar_select %p233, %s25, 1
        %s235 = scalar_lea.vmem %s1, %s234
        %p236 = pneg %p82
        %p237 = pneg %p79
        %p238 = pneg %p103
        %p239 = pneg %p100
        %p240 = pneg %p124
        %p241 = pneg %p121
        %p242 = pneg %p145
        %p243 = pneg %p142
        %p244 = pneg %p173
        %p245 = pneg %p170
        %s246 = sand.u32 %s160, 1
        %s247 = scalar_lea.sflag [#allocation4], %s246
        %s248 = sand.u32 %s160, 1
        %s249 = scalar_lea.vmem [#allocation3], %s248
        %p250 = scmp.lt.s32.totalorder %s25, 1
        %s251 = scalar_select %p250, %s25, 1
        %p252 = scmp.lt.s32.totalorder %s26, 0
        %s253 = scalar_select %p252, %s26, 0
        %s254 = sadd.s32 %s253, %s251
        %s255 = smul.addr %s254, 8
        %s256 = scalar_lea.vmem %s0, %s255
        %p257 = scmp.lt.s32.totalorder %s25, 1
        %s258 = scalar_select %p257, %s25, 1
        %s259 = scalar_lea.vmem %s1, %s258
        %v260 = vld [vmem:[%s256] sm:$0xff]
        %v261 = vld [vmem:[%s2] sm:$0xff]
        %v262 = vld [vmem:[%s2 + $0x8] sm:$0xff]
        %v263 = vld [vmem:[%s2 + $0x10] sm:$0xff]
        %v264 = vld [vmem:[%s2 + $0x18] sm:$0xff]
        %v265 = vld [vmem:[%s2 + $0x20] sm:$0xff]
        %v266 = vld [vmem:[%s2 + $0x28] sm:$0xff]
        %v267 = vld [vmem:[%s2 + $0x30] sm:$0xff]
        %v268 = vld [vmem:[%s2 + $0x38] sm:$0xff]
        %v269 = vld [vmem:[%s259] sm:$0x1]
        %v271 = vperm.slane %v269, 0
        %vm273 = vcmask 523264
        %v275 = vsel %vm273, %v260, 0
        %277 = vmatpush.msra.mxu0 0.0
        %278 = vmatpush.msra.mxu0 0.0
        %279 = vmatpush.msra.mxu0 0.0
        %280 = vmatpush.msra.mxu0 0.0
        %281 = vmatpush.msra.mxu0 0.0
        %282 = vmatpush.msra.mxu0 0.0
        %283 = vmatpush.msra.mxu0 0.0
        %284 = vmatpush.msra.mxu0 0.0
        %285 = vmatpush.msra.mxu0 %v268
        %286 = vmatpush.msra.mxu0 %v267
        %287 = vmatpush.msra.mxu0 %v266
        %288 = vmatpush.msra.mxu0 %v265
        %289 = vmatpush.msra.mxu0 %v264
        %290 = vmatpush.msra.mxu0 %v263
        %291 = vmatpush.msra.mxu0 %v262
        %292 = vmatpush.msra.mxu0 %v261
        %293 = vmatmul.f32.gmra.mxu0 %v275
        %v294 = vpop.f32.mrf.mxu0
        %v295 = vadd.f32 %v271, %v294
        %296 = vdwg.mxu0
        %v297 = vmax.f32 %v295, 0.0
        %v298 = vld [vmem:[%s3] sm:$0x1]
        %v300 = vperm.slane %v298, 0
        %v302 = vmul.f32 %v297, %v300
        %vm303 = vcmask 261120
        %v304 = vsel %vm303, %v302, 0.0
        %305 = vadd.xlane.f32.xlu0 %v304
        %v306 = vpop.xlane.xlu0 %305
        %v307 = vld [vmem:[#allocation2] sm:$0x1]
        %309 = vset.pattern.permute.xlu0 0
        %310 = vperm.xlu0 %309, %v307
        %v311 = vpop.permute.xlu0 %310
        %v313 = vperm.slane %v311, 0
        %v314 = vadd.f32 %v306, %v313
        %v315 = vsub.f32 0.0, %v314
        %v316 = vmul.f32 %v315, 1.442695
        %v317 = vpow.pop %v316
        %v318 = vadd.f32 %v317, 1.0
        %v319 = vrcp.pop %v318
        %v320 = vmul.f32 %v318, %v319
        %v321 = vsub.f32 1.0, %v320
        %v322 = vmul.f32 %v319, %v321
        %v323 = vadd.f32 %v319, %v322
        %vm324 = vweird.f32 %v318
        %vm325 = vweird.f32 %v319
        %vm326 = vmor %vm324, %vm325
        %v327 = vsel %vm326, %v319, %v323
        %v328 = vand.u32 2147483647, %v318
        %vm329 = vcmp.eq.f32.partialorder %v328, 8.507059e+37
        %v330 = vand.u32 %v318, 2147483648
        %v331 = vor.u32 1.1754944e-38, %v330
        %v332 = vsel %vm329, %v331, %v327
        %v334 = vlaneseq
        %v335 = vand.u32 %v334, 127
        %v336 = vperm.slane %v332, %v335
        %vm338 = vcmask 57344
        %339 = vst.msk [vmem:[%s249] sm:$0x1] %vm338, %v336
        %s340 = sand.u32 %s160, 1
        %s341 = scalar_lea.sflag [#allocation4], %s340
        %s342 = sand.u32 %s160, 1
        %s343 = scalar_lea.vmem [#allocation3], %s342
        // Predicated region
        $region41: #{tpu_custom_call.1} parent=39 // pred_check
          %p344 = pneg %p170
        $region42: #{tpu_custom_call.1} parent=39 // pred_check_branch
          %346 = sbr.rel (%p344) target = $region44
        $region43: #{tpu_custom_call.1} parent=39 // pred_region
          %348 = vsyncadd %s341, 0
          %s349 = sadd.s32 %s26, %s25
          %s350 = scalar_lea.hbm %s5, %s349
          %s352 = sshll.u32 %s343, 4
          %s353 = int_to_ptr.vmem [resolvable:$true] %s352
          %s354 = sshll.u32 %s350, 4
          %s355 = int_to_ptr.hbm [resolvable:$true] %s354
          %357 = dma.vmem_to_hbm [thread:$0]  %s353, 16, %s355, %s341
        $region44: #{tpu_custom_call.1} parent=39 // pred_fallthru
          _
      $region40: #{tpu_custom_call.1} parent=5 // pred_fallthru
        _
      %p358 = scmp.le.s32.totalorder 2, %s16
      // Predicated region
      $region45: #{tpu_custom_call.1} parent=5 // pred_check
        %p359 = pneg %p358
      $region46: #{tpu_custom_call.1} parent=5 // pred_check_branch
        %361 = sbr.rel (%p359) target = $region48
      $region47: #{tpu_custom_call.1} parent=5 // pred_region
        %s362 = ssub.s32 %s16, 2
        // Predicated region
        $region49: #{tpu_custom_call.1} parent=47 // pred_check
          %p363 = pneg %p176
        $region50: #{tpu_custom_call.1} parent=47 // pred_check_branch
          %365 = sbr.rel (%p363) target = $region52
        $region51: #{tpu_custom_call.1} parent=47 // pred_region
          %s366 = sand.u32 %s161, 1
          %s367 = scalar_lea.sflag [#allocation4], %s366
          %s368 = sand.u32 %s161, 1
          %s369 = scalar_lea.vmem [#allocation3], %s368
          %371 = dma.done %s367, 16
        $region52: #{tpu_custom_call.1} parent=47 // pred_fallthru
          _
      $region48: #{tpu_custom_call.1} parent=5 // pred_fallthru
        _
    $region6: #{tpu_custom_call.1} parent=1 // loop_footer
      %s20 = sadd.s32 1, %s16
    $region7: #{tpu_custom_call.1} parent=1 // loop_footer_branch
      %15 = sbr.rel target = $region3
    $region8: #{tpu_custom_call.1} parent=1 // loop_exit
      _
    %372 = vsyncpa [#allocation4], 1
    %s373 = scalar_lea.sflag [#allocation4], 1
    %374 = vsyncpa %s373, 1

</llo_original>
